<compile_context>
chip_gen: v7x
topology: tpu7x:2x2x1
jax: 0.10.0
libtpu: 0.0.40
codegen_flags: <defaults>
</compile_context>

<pallas_src>
import numpy as np
import jax
import jax.numpy as jnp
from jax.experimental import pallas as pl
from jax.experimental.pallas import tpu as pltpu

_BN_EPS = 1e-5
_VMEM_BUDGET = 24 * 1024 * 1024   # target for double-buffered per-step blocks
_VMEM_LIMIT = 48 * 1024 * 1024    # explicit scoped-VMEM limit (< v7x 64 MiB)


def _upsample_matrix(n_in: int) -> np.ndarray:
    """(2*n_in, n_in) matrix of 2x bilinear upsampling, align_corners=False
    (matches torch F.interpolate(scale_factor=2, mode='bilinear'))."""
    n_out = 2 * n_in
    dst = np.arange(n_out, dtype=np.float64)
    src = np.clip(dst / 2.0 - 0.25, 0.0, n_in - 1.0)
    lo = np.floor(src).astype(np.int64)
    hi = np.minimum(lo + 1, n_in - 1)
    w_hi = src - lo
    w_lo = 1.0 - w_hi
    U = np.zeros((n_out, n_in), dtype=np.float64)
    U[np.arange(n_out), lo] += w_lo
    U[np.arange(n_out), hi] += w_hi
    return U.astype(np.float32)


def _pick_tile(total: int, per_lane_bytes: int, budget_bytes: int) -> int:
    """Largest 128-aligned divisor of `total` (or `total` itself) whose
    double-buffered footprint 2*per_lane_bytes*tile fits `budget_bytes`.
    Falls back to the smallest aligned divisor (relies on vmem_limit headroom)
    when nothing fits."""
    cands = [total] + [t for t in range(128, total, 128) if total % t == 0]
    fits = [t for t in cands if 2 * per_lane_bytes * t <= budget_bytes]
    return max(fits) if fits else min(cands)


def _row_tile(h: int) -> int:
    """Row tile for the upsample pass: multiple of 8 dividing h, leaving >=2
    tiles when possible (keeps both v7x TensorCores busy)."""
    if h % 8 != 0:
        return h
    best, t = 8, 8
    while t <= h // 2:
        if h % t == 0:
            best = t
        t += 8
    return best


def _cparams(*sem):
    return pltpu.CompilerParams(dimension_semantics=sem,
                                vmem_limit_bytes=_VMEM_LIMIT)


# ---------------------------------------------------------------------------
# Kernels
# ---------------------------------------------------------------------------

def _sig_kernel(xp_ref, g_ref, w1_ref, w2_ref, b12_ref, w3_ref, b3_ref, sig_ref):
    # conv1 (space-to-depth matmul) + conv2 (1x1): two accumulated MXU matmuls
    pre = (jnp.dot(w1_ref[...], xp_ref[0], preferred_element_type=jnp.float32)
           + jnp.dot(w2_ref[...], g_ref[0], preferred_element_type=jnp.float32)
           + b12_ref[...])                                   # (inter, ts)
    act = jnp.maximum(pre, 0.0)                              # ReLU (is_leaky=False)
    # conv3 (inter -> 1): tiny contraction on VPU, keeps MXU columns free
    psi = jnp.sum(act * w3_ref[...], axis=0, keepdims=True) + b3_ref[0]  # (1, ts)
    # sigmoid via tanh (EUP slot) instead of a VPU divide
    sig_ref[0] = 0.5 * (jnp.tanh(0.5 * psi) + 1.0)


def _upsample_kernel(sig_ref, uh_ref, uwt_ref, up_ref):
    # separable 2x bilinear upsample: UH_rows @ sig2d @ UW^T (tiny dots; keep
    # f32/HIGHEST here so the attention map stays accurate — negligible cost)
    t = jnp.dot(uh_ref[...], sig_ref[0], preferred_element_type=jnp.float32,
                precision=jax.lax.Precision.HIGHEST)          # (th, Wh)
    up_ref[0] = jnp.dot(t, uwt_ref[...], preferred_element_type=jnp.float32,
                        precision=jax.lax.Precision.HIGHEST)  # (th, W)


def _bn_stats_kernel(x_ref, up_ref, w4_ref, psum_ref, pssq_ref):
    # BN partial sums of conv4(gate*x); accumulated in the resident output
    # block across the spatial-tile grid axis ("arbitrary"); conv4 result is
    # NOT written to HBM (recomputed in pass 4).
    @pl.when(pl.program_id(1) == 0)
    def _():
        psum_ref[...] = jnp.zeros_like(psum_ref)
        pssq_ref[...] = jnp.zeros_like(pssq_ref)

    y = (x_ref[0] * up_ref[0]).astype(jnp.bfloat16)           # (Cx, tp) gate
    r0 = jnp.dot(w4_ref[...], y, preferred_element_type=jnp.float32)  # (Cx, tp)
    psum_ref[0] += jnp.sum(r0, axis=1, keepdims=True)         # (Cx, 1)
    pssq_ref[0] += jnp.sum(r0 * r0, axis=1, keepdims=True)    # (Cx, 1)


def _gate_conv4_bn_kernel(x_ref, up_ref, w4_ref, a_ref, b_ref, out_ref):
    # recompute gate*x + conv4, then apply folded BN scale/shift in one pass
    y = (x_ref[0] * up_ref[0]).astype(jnp.bfloat16)
    r0 = jnp.dot(w4_ref[...], y, preferred_element_type=jnp.float32)  # (Cx, tp)
    out_ref[0] = r0 * a_ref[...] + b_ref[...]


# ---------------------------------------------------------------------------
# Wrapper
# ---------------------------------------------------------------------------

def attn_gating_forward(x, g, params, *, tile_p=None, tile_s=None):
    """x: (N, Cx, H, W), g: (N, Cg, H/2, W/2)  ->  (N, Cx, H, W)   (NCHW)."""
    N, Cx, H, W = x.shape
    Ng, Cg, Hh, Wh = g.shape
    assert Ng == N and H % 2 == 0 and W % 2 == 0 and (Hh, Wh) == (H // 2, W // 2)
    inter = params["w1"].shape[0]
    S, P = Hh * Wh, H * W

    # ---- tile selection from an explicit VMEM budget ------------------------
    per_lane1 = (4 * Cx + Cg) * 2 + 4                 # bf16 xp + bf16 g + f32 sig
    wbytes1 = 2 * (inter * (4 * Cx + Cg) * 2 + inter * 8 + 4096)
    ts = tile_s if tile_s is not None else _pick_tile(
        S, per_lane1, max(0, _VMEM_BUDGET - wbytes1))
    per_lane34 = (2 * Cx + 1) * 4                     # f32 x + f32 up + f32 out
    wbytes34 = 2 * (Cx * Cx * 2 + 2 * Cx * 4 + 4096)
    tp = tile_p if tile_p is not None else _pick_tile(
        P, per_lane34, max(0, _VMEM_BUDGET - wbytes34))
    assert S % ts == 0 and (ts == S or ts % 128 == 0)
    assert P % tp == 0 and (tp == P or tp % 128 == 0)
    Ts, T = S // ts, P // tp

    # ---- layout glue (channels-first, spatially flattened) ------------------
    x_cf = x.reshape(N, Cx, P)                                # free reshape
    # TODO(synk): space-to-depth of x still materialized by XLA (bf16 halves
    # its HBM cost); fully on-chip reorder needs lane-strided access.
    xp = (x.reshape(N, Cx, Hh, 2, Wh, 2)
            .transpose(0, 1, 3, 5, 2, 4)
            .reshape(N, Cx * 4, S)
            .astype(jnp.bfloat16))
    g_cf = g.reshape(N, Cg, S).astype(jnp.bfloat16)

    w1m = params["w1"].reshape(inter, Cx * 4).astype(jnp.bfloat16)
    w2m = params["w2"].reshape(inter, Cg).astype(jnp.bfloat16)
    b12 = (params["b1"] + params["b2"]).reshape(inter, 1).astype(jnp.float32)
    w3c = params["w3"].reshape(inter, 1).astype(jnp.float32)
    b3s = params["b3"].reshape(1).astype(jnp.float32)
    w4m = params["w4"].reshape(Cx, Cx).astype(jnp.bfloat16)
    # conv4's bias b4 cancels exactly under training-mode BatchNorm -> unused.

    UH = jnp.asarray(_upsample_matrix(Hh))                    # (H, Hh)
    UWT = jnp.asarray(_upsample_matrix(Wh).T)                 # (Wh, W)

    # ---- pass 1: conv1+conv2 (two accumulated matmuls) -> ReLU -> conv3 ->
    #              sigmoid, at low resolution --------------------------------
    sig = pl.pallas_call(
        _sig_kernel,
        out_shape=jax.ShapeDtypeStruct((N, 1, S), jnp.float32),
        grid_spec=pltpu.PrefetchScalarGridSpec(
            num_scalar_prefetch=0,
            grid=(N, Ts),
            in_specs=[
                pl.BlockSpec((1, Cx * 4, ts), lambda n, s: (n, 0, s)),
                pl.BlockSpec((1, Cg, ts), lambda n, s: (n, 0, s)),
                pl.BlockSpec((inter, Cx * 4), lambda n, s: (0, 0)),
                pl.BlockSpec((inter, Cg), lambda n, s: (0, 0)),
                pl.BlockSpec((inter, 1), lambda n, s: (0, 0)),
                pl.BlockSpec((inter, 1), lambda n, s: (0, 0)),
                pl.BlockSpec(memory_space=pltpu.MemorySpace.SMEM),  # b3 scalar
            ],
            out_specs=pl.BlockSpec((1, 1, ts), lambda n, s: (n, 0, s)),
        ),
        compiler_params=_cparams("parallel", "parallel"),
    )(xp, g_cf, w1m, w2m, b12, w3c, b3s)

    # ---- pass 2: separable 2x bilinear upsample, tiled over output rows ----
    th = _row_tile(H)
    up = pl.pallas_call(
        _upsample_kernel,
        out_shape=jax.ShapeDtypeStruct((N, H, W), jnp.float32),
        grid_spec=pltpu.PrefetchScalarGridSpec(
            num_scalar_prefetch=0,
            grid=(N, H // th),
            in_specs=[
                pl.BlockSpec((1, Hh, Wh), lambda n, r: (n, 0, 0)),
                pl.BlockSpec((th, Hh), lambda n, r: (r, 0)),
                pl.BlockSpec((Wh, W), lambda n, r: (0, 0)),
            ],
            out_specs=pl.BlockSpec((1, th, W), lambda n, r: (n, r, 0)),
        ),
        compiler_params=_cparams("parallel", "parallel"),
    )(sig.reshape(N, Hh, Wh), UH, UWT)
    up_flat = up.reshape(N, 1, P)                             # free reshape

    # ---- pass 3: gate*x + conv4 -> BN partial sums only (no res writeback) --
    psum, pssq = pl.pallas_call(
        _bn_stats_kernel,
        out_shape=(jax.ShapeDtypeStruct((N, Cx, 1), jnp.float32),
                   jax.ShapeDtypeStruct((N, Cx, 1), jnp.float32)),
        grid_spec=pltpu.PrefetchScalarGridSpec(
            num_scalar_prefetch=0,
            grid=(N, T),
            in_specs=[
                pl.BlockSpec((1, Cx, tp), lambda n, t: (n, 0, t)),
                pl.BlockSpec((1, 1, tp), lambda n, t: (n, 0, t)),
                pl.BlockSpec((Cx, Cx), lambda n, t: (0, 0)),
            ],
            out_specs=(
                pl.BlockSpec((1, Cx, 1), lambda n, t: (n, 0, 0)),
                pl.BlockSpec((1, Cx, 1), lambda n, t: (n, 0, 0)),
            ),
        ),
        compiler_params=_cparams("parallel", "arbitrary"),
    )(x_cf, up_flat, w4m)

    # ---- BN statistics (tiny batch reduction in XLA) + affine fold ----------
    count = jnp.float32(N * P)
    mean = jnp.sum(psum, axis=0) / count                      # (Cx, 1)
    var = jnp.maximum(jnp.sum(pssq, axis=0) / count - mean * mean, 0.0)
    a = params["bn_gamma"].reshape(Cx, 1) * jax.lax.rsqrt(var + _BN_EPS)
    b = params["bn_beta"].reshape(Cx, 1) - mean * a

    # ---- pass 4: recompute gate*x + conv4, apply folded BN; output is NCHW --
    out = pl.pallas_call(
        _gate_conv4_bn_kernel,
        out_shape=jax.ShapeDtypeStruct((N, Cx, P), jnp.float32),
        grid_spec=pltpu.PrefetchScalarGridSpec(
            num_scalar_prefetch=0,
            grid=(N, T),
            in_specs=[
                pl.BlockSpec((1, Cx, tp), lambda n, t: (n, 0, t)),
                pl.BlockSpec((1, 1, tp), lambda n, t: (n, 0, t)),
                pl.BlockSpec((Cx, Cx), lambda n, t: (0, 0)),
                pl.BlockSpec((Cx, 1), lambda n, t: (0, 0)),
                pl.BlockSpec((Cx, 1), lambda n, t: (0, 0)),
            ],
            out_specs=pl.BlockSpec((1, Cx, tp), lambda n, t: (n, 0, t)),
        ),
        compiler_params=_cparams("parallel", "parallel"),
    )(x_cf, up_flat, w4m, a, b)

    return out.reshape(N, Cx, H, W)


# ---------------------------------------------------------------------------
# Plain-JAX reference (mirrors the PyTorch forward; high-precision baseline)
# ---------------------------------------------------------------------------

def _reference(x, g, params):
    hp = jax.lax.Precision.HIGHEST
    N, Cx, H, W = x.shape
    theta = jax.lax.conv_general_dilated(
        x, params["w1"], (2, 2), "VALID",
        dimension_numbers=("NCHW", "OIHW", "NCHW"),
        precision=hp) + params["b1"][None, :, None, None]
    phi = jnp.einsum("nchw,oc->nohw", g,
                     params["w2"].reshape(params["w2"].shape[0], -1),
                     precision=hp) + params["b2"][None, :, None, None]
    act = jnp.maximum(theta + phi, 0.0)
    psi = jnp.einsum("nchw,oc->nohw", act, params["w3"].reshape(1, -1),
                     precision=hp) + params["b3"][None, :, None, None]
    sig = jax.nn.sigmoid(psi)
    Hh, Wh = sig.shape[2], sig.shape[3]
    UH = jnp.asarray(_upsample_matrix(Hh))
    UW = jnp.asarray(_upsample_matrix(Wh))
    up = jnp.einsum("hi,nkij,wj->nkhw", UH, sig, UW, precision=hp)
    y = up * x
    res = jnp.einsum("nchw,oc->nohw", y, params["w4"].reshape(Cx, Cx),
                     precision=hp) + params["b4"][None, :, None, None]
    mean = res.mean(axis=(0, 2, 3), keepdims=True)
    var = ((res - mean) ** 2).mean(axis=(0, 2, 3), keepdims=True)
    gamma = params["bn_gamma"][None, :, None, None]
    beta = params["bn_beta"][None, :, None, None]
    return (res - mean) / jnp.sqrt(var + _BN_EPS) * gamma + beta


if __name__ == "__main__":
    N, Cx, Cg, inter, H, W = 2, 4, 8, 8, 16, 16
    key = jax.random.PRNGKey(0)
    ks = jax.random.split(key, 10)
    params = {
        "w1": 0.5 * jax.random.normal(ks[0], (inter, Cx, 2, 2), jnp.float32),
        "b1": 0.5 * jax.random.normal(ks[1], (inter,), jnp.float32),
        "w2": 0.5 * jax.random.normal(ks[2], (inter, Cg, 1, 1), jnp.float32),
        "b2": 0.5 * jax.random.normal(ks[3], (inter,), jnp.float32),
        "w3": 0.5 * jax.random.normal(ks[4], (1, inter, 1, 1), jnp.float32),
        "b3": 0.5 * jax.random.normal(ks[5], (1,), jnp.float32),
        "w4": 0.5 * jax.random.normal(ks[6], (Cx, Cx, 1, 1), jnp.float32),
        "b4": 0.5 * jax.random.normal(ks[7], (Cx,), jnp.float32),
        "bn_gamma": jnp.ones((Cx,), jnp.float32),    # PyTorch BN default init
        "bn_beta": jnp.zeros((Cx,), jnp.float32),
    }
    x = jax.random.normal(ks[8], (N, Cx, H, W), jnp.float32)
    g = jax.random.normal(ks[9], (N, Cg, H // 2, W // 2), jnp.float32)

    # tile_p=128 exercises the multi-tile path (on-chip BN accumulation + the
    # recompute-fused BN apply over 2 spatial tiles).
    out = attn_gating_forward(x, g, params, tile_p=128)
    out = jax.block_until_ready(out)

    ref = jax.block_until_ready(_reference(x, g, params))
    # bf16-operand / f32-accumulate matmuls in the kernel vs f32 HIGHEST ref.
    np.testing.assert_allclose(np.asarray(out), np.asarray(ref),
                               rtol=2e-2, atol=5e-2)

    print("KERNEL_OK")
</pallas_src>

<mosaic_0001>
module attributes {stable_mosaic.version = 11 : i64} {
  func.func @_sig_kernel(%arg0: i32, %arg1: i32, %arg2: memref<1x16x64xbf16, #tpu.memory_space<vmem>>, %arg3: memref<1x8x64xbf16, #tpu.memory_space<vmem>>, %arg4: memref<8x16xbf16, #tpu.memory_space<vmem>>, %arg5: memref<8x8xbf16, #tpu.memory_space<vmem>>, %arg6: memref<8x1xf32, #tpu.memory_space<vmem>>, %arg7: memref<8x1xf32, #tpu.memory_space<vmem>>, %arg8: memref<1xf32, #tpu.memory_space<smem>>, %arg9: memref<1x1x64xf32, #tpu.memory_space<vmem>>) attributes {dimension_semantics = [#tpu.dimension_semantics<parallel>, #tpu.dimension_semantics<parallel>], iteration_bounds = array<i64: 2, 1>, scalar_prefetch = 0 : i64, scratch_operands = 0 : i64, tpu.core_type = #tpu.core_type<tc>, window_params = [{transform_indices = @transform_0, window_bounds = array<i64: 1, 16, 64>}, {transform_indices = @transform_1, window_bounds = array<i64: 1, 8, 64>}, {pipeline_mode = #tpu.pipeline_mode<synchronous>, transform_indices = @transform_2, window_bounds = array<i64: 8, 16>}, {pipeline_mode = #tpu.pipeline_mode<synchronous>, transform_indices = @transform_3, window_bounds = array<i64: 8, 8>}, {pipeline_mode = #tpu.pipeline_mode<synchronous>, transform_indices = @transform_4, window_bounds = array<i64: 8, 1>}, {pipeline_mode = #tpu.pipeline_mode<synchronous>, transform_indices = @transform_5, window_bounds = array<i64: 8, 1>}, {transform_indices = @transform_6, window_bounds = array<i64: 1>}, {transform_indices = @transform_7, window_bounds = array<i64: 1, 1, 64>}]} {
    %c0 = arith.constant 0 : index
    %c0_0 = arith.constant 0 : index
    %0 = vector.load %arg4[%c0, %c0_0] : memref<8x16xbf16, #tpu.memory_space<vmem>>, vector<8x16xbf16>
    %c0_1 = arith.constant 0 : index
    %c0_2 = arith.constant 0 : index
    %c0_3 = arith.constant 0 : index
    %1 = vector.load %arg2[%c0_1, %c0_2, %c0_3] : memref<1x16x64xbf16, #tpu.memory_space<vmem>>, vector<1x16x64xbf16>
    %2 = vector.shape_cast %1 : vector<1x16x64xbf16> to vector<16x64xbf16>
    %cst = arith.constant dense<0.000000e+00> : vector<8x64xf32>
    %3 = tpu.matmul %0, %2, %cst {dimension_numbers = #tpu.dot_dimension_numbers<[1], [0], [0], [1], [0, 0, 1, 1], [], []>} : vector<8x16xbf16>, vector<16x64xbf16>, vector<8x64xf32> -> vector<8x64xf32>
    %c0_4 = arith.constant 0 : index
    %c0_5 = arith.constant 0 : index
    %4 = vector.load %arg5[%c0_4, %c0_5] : memref<8x8xbf16, #tpu.memory_space<vmem>>, vector<8x8xbf16>
    %c0_6 = arith.constant 0 : index
    %c0_7 = arith.constant 0 : index
    %c0_8 = arith.constant 0 : index
    %5 = vector.load %arg3[%c0_6, %c0_7, %c0_8] : memref<1x8x64xbf16, #tpu.memory_space<vmem>>, vector<1x8x64xbf16>
    %6 = vector.shape_cast %5 : vector<1x8x64xbf16> to vector<8x64xbf16>
    %cst_9 = arith.constant dense<0.000000e+00> : vector<8x64xf32>
    %7 = tpu.matmul %4, %6, %cst_9 {dimension_numbers = #tpu.dot_dimension_numbers<[1], [0], [0], [1], [0, 0, 1, 1], [], []>} : vector<8x8xbf16>, vector<8x64xbf16>, vector<8x64xf32> -> vector<8x64xf32>
    %8 = arith.addf %3, %7 : vector<8x64xf32>
    %c0_10 = arith.constant 0 : index
    %c0_11 = arith.constant 0 : index
    %9 = vector.load %arg6[%c0_10, %c0_11] : memref<8x1xf32, #tpu.memory_space<vmem>>, vector<8x1xf32>
    %10 = vector.broadcast %9 : vector<8x1xf32> to vector<8x64xf32>
    %11 = arith.addf %8, %10 : vector<8x64xf32>
    %cst_12 = arith.constant 0.000000e+00 : f32
    %12 = vector.broadcast %cst_12 : f32 to vector<8x64xf32>
    %13 = arith.maximumf %11, %12 : vector<8x64xf32>
    %c0_13 = arith.constant 0 : index
    %c0_14 = arith.constant 0 : index
    %14 = vector.load %arg7[%c0_13, %c0_14] : memref<8x1xf32, #tpu.memory_space<vmem>>, vector<8x1xf32>
    %15 = vector.broadcast %14 : vector<8x1xf32> to vector<8x64xf32>
    %16 = arith.mulf %13, %15 : vector<8x64xf32>
    %cst_15 = arith.constant dense<0.000000e+00> : vector<64xf32>
    %17 = vector.multi_reduction <add>, %16, %cst_15 [0] : vector<8x64xf32> to vector<64xf32>
    %18 = vector.shape_cast %17 : vector<64xf32> to vector<1x64xf32>
    %c0_16 = arith.constant 0 : index
    %19 = memref.load %arg8[%c0_16] : memref<1xf32, #tpu.memory_space<smem>>
    %20 = vector.broadcast %19 : f32 to vector<1x64xf32>
    %21 = arith.addf %18, %20 : vector<1x64xf32>
    %cst_17 = arith.constant 5.000000e-01 : f32
    %22 = vector.broadcast %cst_17 : f32 to vector<1x64xf32>
    %23 = arith.mulf %22, %21 : vector<1x64xf32>
    %24 = math.tanh %23 : vector<1x64xf32>
    %cst_18 = arith.constant 1.000000e+00 : f32
    %25 = vector.broadcast %cst_18 : f32 to vector<1x64xf32>
    %26 = arith.addf %24, %25 : vector<1x64xf32>
    %cst_19 = arith.constant 5.000000e-01 : f32
    %27 = vector.broadcast %cst_19 : f32 to vector<1x64xf32>
    %28 = arith.mulf %27, %26 : vector<1x64xf32>
    %c0_20 = arith.constant 0 : index
    %c0_21 = arith.constant 0 : index
    %c0_22 = arith.constant 0 : index
    %29 = vector.load %arg9[%c0_20, %c0_21, %c0_22] : memref<1x1x64xf32, #tpu.memory_space<vmem>>, vector<1x1x64xf32>
    %30 = vector.shape_cast %29 : vector<1x1x64xf32> to vector<1x64xf32>
    %31 = vector.shape_cast %28 : vector<1x64xf32> to vector<1x1x64xf32>
    tpu.vector_store %arg9[%c0_20, %c0_21, %c0_22], %31 {strides = array<i32>} : memref<1x1x64xf32, #tpu.memory_space<vmem>>, vector<1x1x64xf32>,
    return
  }
  func.func @transform_0(%arg0: i32, %arg1: i32) -> (i32, i32, i32) {
    %c0_i32 = arith.constant 0 : i32
    %c0_i32_0 = arith.constant 0 : i32
    return %arg0, %c0_i32, %arg1 : i32, i32, i32
  }
  func.func @transform_1(%arg0: i32, %arg1: i32) -> (i32, i32, i32) {
    %c0_i32 = arith.constant 0 : i32
    %c0_i32_0 = arith.constant 0 : i32
    return %arg0, %c0_i32, %arg1 : i32, i32, i32
  }
  func.func @transform_2(%arg0: i32, %arg1: i32) -> (i32, i32) {
    %c0_i32 = arith.constant 0 : i32
    %c0_i32_0 = arith.constant 0 : i32
    %c0_i32_1 = arith.constant 0 : i32
    return %c0_i32, %c0_i32_0 : i32, i32
  }
  func.func @transform_3(%arg0: i32, %arg1: i32) -> (i32, i32) {
    %c0_i32 = arith.constant 0 : i32
    %c0_i32_0 = arith.constant 0 : i32
    %c0_i32_1 = arith.constant 0 : i32
    return %c0_i32, %c0_i32_0 : i32, i32
  }
  func.func @transform_4(%arg0: i32, %arg1: i32) -> (i32, i32) {
    %c0_i32 = arith.constant 0 : i32
    %c0_i32_0 = arith.constant 0 : i32
    %c0_i32_1 = arith.constant 0 : i32
    return %c0_i32, %c0_i32_0 : i32, i32
  }
  func.func @transform_5(%arg0: i32, %arg1: i32) -> (i32, i32) {
    %c0_i32 = arith.constant 0 : i32
    %c0_i32_0 = arith.constant 0 : i32
    %c0_i32_1 = arith.constant 0 : i32
    return %c0_i32, %c0_i32_0 : i32, i32
  }
  func.func @transform_6(%arg0: i32, %arg1: i32) -> i32 {
    %c0_i32 = arith.constant 0 : i32
    %c0_i32_0 = arith.constant 0 : i32
    return %c0_i32 : i32
  }
  func.func @transform_7(%arg0: i32, %arg1: i32) -> (i32, i32, i32) {
    %c0_i32 = arith.constant 0 : i32
    %c0_i32_0 = arith.constant 0 : i32
    return %arg0, %c0_i32, %arg1 : i32, i32, i32
  }
}

</mosaic_0001>

<llo_original>
// kernel: tpu_custom_call.1
$region0: #{tpu_custom_call.1}
  #allocation0 [shape = 'u32[]', space=smem, size = 0x4, offset = 0x4, fixed_abs, tag = 'smem constant byte address 0x4 - core index']
  #allocation1 [shape = 'u32[144,128]{1,0:T(1,128)}', space=vmem, size = 0x12000, scoped, tag = 'internal scratch']
  #allocation2 [shape = 'f32[1]{0:T(128)S(6)}', space=smem, size = 0x200, scoped, tag = 'scoped memory for tpu_custom_call.1']
  %s0 = inlined_call_operand.vmem [shape: bf16[2,16,64], index: 0, kind: input, shape index: {}]
  %s1 = inlined_call_operand.vmem [shape: bf16[2,8,64], index: 1, kind: input, shape index: {}]
  %s2 = inlined_call_operand.vmem [shape: bf16[8,16], index: 2, kind: input, shape index: {}]
  %s3 = inlined_call_operand.vmem [shape: bf16[8,8], index: 3, kind: input, shape index: {}]
  %s4 = inlined_call_operand.vmem [shape: f32[8,1], index: 4, kind: input, shape index: {}]
  %s5 = inlined_call_operand.vmem [shape: f32[8,1], index: 5, kind: input, shape index: {}]
  %s6 = inlined_call_operand.<no memory space> [shape: f32[1], index: 6, kind: input, shape index: {}]
  %s7 = inlined_call_operand.hbm [shape: f32[2,1,64], index: 7, kind: output, shape index: {}]
  %s8 = sld [smem:[#allocation0]]
  $region61: #{tpu_custom_call.1} parent=0
    _
  %s10 = ssub.s32 1, %s8
  %s11 = scalar_select 0, %s10, %s8
  %12 = sst [smem:[#allocation2]] %s6
  $region1: #{tpu_custom_call.1} parent=0
    #allocation3 [shape = 'u8[1024]{0}', space=vmem, size = 0x400, scoped, tag = 'output window, operand 0']
    #allocation4 [shape = 's32[2]{0}', space=sflag, size = 0x8, scoped, tag = 'scoped memory for tpu_custom_call.1']
    %13 = vsyncpa [#allocation4], 0
    %s14 = scalar_lea.sflag [#allocation4], 1
    %15 = vsyncpa %s14, 0
    loop: start=0, step=1, limit=4
    $region2: #{tpu_custom_call.1} parent=1 // loop_pre_header
      _
    $region3: #{tpu_custom_call.1} parent=1 // loop_header
      %s17 = sphi 0, %s21
      %p18 = scmp.ge.s32.totalorder %s17, 4
      %s24 = sphi 0, %s36
      %s25 = sphi 0, %s32
      %s26 = sphi 0, %s24
      %s27 = sphi 0, %s25
      %s28 = sphi 0, %s26
      %s29 = sphi 0, %s27
      %s41 = sphi 0, %s43
      %s44 = sphi 0, %s41
      %s45 = sphi 0, %s44
      %s61 = sphi 0, %s45
      %s69 = sphi 0, %s71
      %s72 = sphi 0, %s69
      %s73 = sphi 0, %s72
      %s89 = sphi 0, %s73
      %s93 = sphi 0, %s93
      %s95 = sphi 0, %s93
      %s96 = sphi 0, %s95
      %s110 = sphi 0, %s96
      %s114 = sphi 0, %s114
      %s116 = sphi 0, %s114
      %s117 = sphi 0, %s116
      %s131 = sphi 0, %s117
      %s135 = sphi 0, %s135
      %s137 = sphi 0, %s135
      %s138 = sphi 0, %s137
      %s152 = sphi 0, %s138
      %s156 = sphi 0, %s156
      %s158 = sphi 0, %s156
      %s159 = sphi 0, %s158
      %s173 = sphi 0, %s159
      %s177 = sphi 0, %s177
      %s179 = sphi 0, %s177
      %s180 = sphi 0, %s179
      %s194 = sphi 0, %s180
      %s202 = sphi 0, %s204
      %s205 = sphi 0, %s202
      %s206 = sphi 0, %s205
      %s222 = sphi 0, %s206
    $region4: #{tpu_custom_call.1} parent=1 // loop_header_branch
      %20 = sbr.rel (%p18) target = $region8
    $region5: #{tpu_custom_call.1} parent=1 // loop_body
      %s22 = ssub.s32 %s17, 1
      %s23 = ssub.s32 %s17, 2
      %s30 = sadd.s32 1, %s25
      %p31 = scmp.ge.s32.totalorder %s30, 1
      %s32 = scalar_select %p31, 0, %s30
      %s33 = sadd.s32 1, %s24
      %s34 = scalar_select %p31, %s33, %s24
      %p35 = scmp.ge.s32.totalorder %s34, 2
      %s36 = scalar_select %p35, 0, %s34
      %s37 = ssub.s32 %s24, %s36
      %s38 = ssub.s32 %s25, %s32
      %s39 = sor.u32 %s37, %s38
      %p40 = scmp.eq.s32.totalorder %s39, 0
      %s42 = sadd.s32 %s41, 1
      %s43 = scalar_select %p40, %s41, %s42
      %p46 = pneg %p40
      %p47 = scmp.eq.s32.totalorder %s17, 1
      %p48 = por %p46, %p47
      %p49 = scmp.ne.s32.totalorder %s41, %s44
      %p50 = scmp.eq.s32.totalorder %s17, 0
      %p51 = por %p49, %p50
      %p52 = scmp.ne.s32.totalorder %s41, %s44
      %p53 = scmp.eq.s32.totalorder %s22, 1
      %p54 = por %p52, %p53
      %p55 = scmp.ne.s32.totalorder %s44, %s45
      %p56 = scmp.eq.s32.totalorder %s22, 0
      %p57 = por %p55, %p56
      %p58 = scmp.ne.s32.totalorder %s44, %s45
      %p59 = scmp.eq.s32.totalorder %s23, 1
      %p60 = por %p58, %p59
      %p62 = scmp.ne.s32.totalorder %s45, %s61
      %p63 = scmp.eq.s32.totalorder %s23, 0
      %p64 = por %p62, %p63
      %s65 = ssub.s32 %s24, %s36
      %s66 = ssub.s32 %s25, %s32
      %s67 = sor.u32 %s65, %s66
      %p68 = scmp.eq.s32.totalorder %s67, 0
      %s70 = sadd.s32 %s69, 1
      %s71 = scalar_select %p68, %s69, %s70
      %p74 = pneg %p68
      %p75 = scmp.eq.s32.totalorder %s17, 1
      %p76 = por %p74, %p75
      %p77 = scmp.ne.s32.totalorder %s69, %s72
      %p78 = scmp.eq.s32.totalorder %s17, 0
      %p79 = por %p77, %p78
      %p80 = scmp.ne.s32.totalorder %s69, %s72
      %p81 = scmp.eq.s32.totalorder %s22, 1
      %p82 = por %p80, %p81
      %p83 = scmp.ne.s32.totalorder %s72, %s73
      %p84 = scmp.eq.s32.totalorder %s22, 0
      %p85 = por %p83, %p84
      %p86 = scmp.ne.s32.totalorder %s72, %s73
      %p87 = scmp.eq.s32.totalorder %s23, 1
      %p88 = por %p86, %p87
      %p90 = scmp.ne.s32.totalorder %s73, %s89
      %p91 = scmp.eq.s32.totalorder %s23, 0
      %p92 = por %p90, %p91
      %s94 = sadd.s32 %s93, 1
      %p97 = scmp.eq.s32.totalorder %s17, 1
      %p98 = scmp.ne.s32.totalorder %s93, %s95
      %p99 = scmp.eq.s32.totalorder %s17, 0
      %p100 = por %p98, %p99
      %p101 = scmp.ne.s32.totalorder %s93, %s95
      %p102 = scmp.eq.s32.totalorder %s22, 1
      %p103 = por %p101, %p102
      %p104 = scmp.ne.s32.totalorder %s95, %s96
      %p105 = scmp.eq.s32.totalorder %s22, 0
      %p106 = por %p104, %p105
      %p107 = scmp.ne.s32.totalorder %s95, %s96
      %p108 = scmp.eq.s32.totalorder %s23, 1
      %p109 = por %p107, %p108
      %p111 = scmp.ne.s32.totalorder %s96, %s110
      %p112 = scmp.eq.s32.totalorder %s23, 0
      %p113 = por %p111, %p112
      %s115 = sadd.s32 %s114, 1
      %p118 = scmp.eq.s32.totalorder %s17, 1
      %p119 = scmp.ne.s32.totalorder %s114, %s116
      %p120 = scmp.eq.s32.totalorder %s17, 0
      %p121 = por %p119, %p120
      %p122 = scmp.ne.s32.totalorder %s114, %s116
      %p123 = scmp.eq.s32.totalorder %s22, 1
      %p124 = por %p122, %p123
      %p125 = scmp.ne.s32.totalorder %s116, %s117
      %p126 = scmp.eq.s32.totalorder %s22, 0
      %p127 = por %p125, %p126
      %p128 = scmp.ne.s32.totalorder %s116, %s117
      %p129 = scmp.eq.s32.totalorder %s23, 1
      %p130 = por %p128, %p129
      %p132 = scmp.ne.s32.totalorder %s117, %s131
      %p133 = scmp.eq.s32.totalorder %s23, 0
      %p134 = por %p132, %p133
      %s136 = sadd.s32 %s135, 1
      %p139 = scmp.eq.s32.totalorder %s17, 1
      %p140 = scmp.ne.s32.totalorder %s135, %s137
      %p141 = scmp.eq.s32.totalorder %s17, 0
      %p142 = por %p140, %p141
      %p143 = scmp.ne.s32.totalorder %s135, %s137
      %p144 = scmp.eq.s32.totalorder %s22, 1
      %p145 = por %p143, %p144
      %p146 = scmp.ne.s32.totalorder %s137, %s138
      %p147 = scmp.eq.s32.totalorder %s22, 0
      %p148 = por %p146, %p147
      %p149 = scmp.ne.s32.totalorder %s137, %s138
      %p150 = scmp.eq.s32.totalorder %s23, 1
      %p151 = por %p149, %p150
      %p153 = scmp.ne.s32.totalorder %s138, %s152
      %p154 = scmp.eq.s32.totalorder %s23, 0
      %p155 = por %p153, %p154
      %s157 = sadd.s32 %s156, 1
      %p160 = scmp.eq.s32.totalorder %s17, 1
      %p161 = scmp.ne.s32.totalorder %s156, %s158
      %p162 = scmp.eq.s32.totalorder %s17, 0
      %p163 = por %p161, %p162
      %p164 = scmp.ne.s32.totalorder %s156, %s158
      %p165 = scmp.eq.s32.totalorder %s22, 1
      %p166 = por %p164, %p165
      %p167 = scmp.ne.s32.totalorder %s158, %s159
      %p168 = scmp.eq.s32.totalorder %s22, 0
      %p169 = por %p167, %p168
      %p170 = scmp.ne.s32.totalorder %s158, %s159
      %p171 = scmp.eq.s32.totalorder %s23, 1
      %p172 = por %p170, %p171
      %p174 = scmp.ne.s32.totalorder %s159, %s173
      %p175 = scmp.eq.s32.totalorder %s23, 0
      %p176 = por %p174, %p175
      %s178 = sadd.s32 %s177, 1
      %p181 = scmp.eq.s32.totalorder %s17, 1
      %p182 = scmp.ne.s32.totalorder %s177, %s179
      %p183 = scmp.eq.s32.totalorder %s17, 0
      %p184 = por %p182, %p183
      %p185 = scmp.ne.s32.totalorder %s177, %s179
      %p186 = scmp.eq.s32.totalorder %s22, 1
      %p187 = por %p185, %p186
      %p188 = scmp.ne.s32.totalorder %s179, %s180
      %p189 = scmp.eq.s32.totalorder %s22, 0
      %p190 = por %p188, %p189
      %p191 = scmp.ne.s32.totalorder %s179, %s180
      %p192 = scmp.eq.s32.totalorder %s23, 1
      %p193 = por %p191, %p192
      %p195 = scmp.ne.s32.totalorder %s180, %s194
      %p196 = scmp.eq.s32.totalorder %s23, 0
      %p197 = por %p195, %p196
      %s198 = ssub.s32 %s24, %s36
      %s199 = ssub.s32 %s25, %s32
      %s200 = sor.u32 %s198, %s199
      %p201 = scmp.eq.s32.totalorder %s200, 0
      %s203 = sadd.s32 %s202, 1
      %s204 = scalar_select %p201, %s202, %s203
      %p207 = pneg %p201
      %p208 = scmp.eq.s32.totalorder %s17, 1
      %p209 = por %p207, %p208
      %p210 = scmp.ne.s32.totalorder %s202, %s205
      %p211 = scmp.eq.s32.totalorder %s17, 0
      %p212 = por %p210, %p211
      %p213 = scmp.ne.s32.totalorder %s202, %s205
      %p214 = scmp.eq.s32.totalorder %s22, 1
      %p215 = por %p213, %p214
      %p216 = scmp.ne.s32.totalorder %s205, %s206
      %p217 = scmp.eq.s32.totalorder %s22, 0
      %p218 = por %p216, %p217
      %p219 = scmp.ne.s32.totalorder %s205, %s206
      %p220 = scmp.eq.s32.totalorder %s23, 1
      %p221 = por %p219, %p220
      %p223 = scmp.ne.s32.totalorder %s206, %s222
      %p224 = scmp.eq.s32.totalorder %s23, 0
      %p225 = por %p223, %p224
      %p226 = scmp.le.s32.totalorder 1, %s17
      %p227 = scmp.lt.s32.totalorder %s17, 3
      %p228 = pnand %p226, %p227
      %p229 = pneg %p228
      // Predicated region
      $region9: #{tpu_custom_call.1} parent=5 // pred_check
        _
      $region10: #{tpu_custom_call.1} parent=5 // pred_check_branch
        %231 = sbr.rel (%p228) target = $region12
      $region11: #{tpu_custom_call.1} parent=5 // pred_region
        %s232 = ssub.s32 %s17, 1
        // Predicated region
        $region13: #{tpu_custom_call.1} parent=11 // pred_check
          %p233 = pneg %p106
        $region14: #{tpu_custom_call.1} parent=11 // pred_check_branch
          %235 = sbr.rel (%p233) target = $region16
        $region15: #{tpu_custom_call.1} parent=11 // pred_region
          _
        $region16: #{tpu_custom_call.1} parent=11 // pred_fallthru
          _
        // Predicated region
        $region17: #{tpu_custom_call.1} parent=11 // pred_check
          %p236 = pneg %p127
        $region18: #{tpu_custom_call.1} parent=11 // pred_check_branch
          %238 = sbr.rel (%p236) target = $region20
        $region19: #{tpu_custom_call.1} parent=11 // pred_region
          _
        $region20: #{tpu_custom_call.1} parent=11 // pred_fallthru
          _
        // Predicated region
        $region21: #{tpu_custom_call.1} parent=11 // pred_check
          %p239 = pneg %p148
        $region22: #{tpu_custom_call.1} parent=11 // pred_check_branch
          %241 = sbr.rel (%p239) target = $region24
        $region23: #{tpu_custom_call.1} parent=11 // pred_region
          _
        $region24: #{tpu_custom_call.1} parent=11 // pred_fallthru
          _
        // Predicated region
        $region25: #{tpu_custom_call.1} parent=11 // pred_check
          %p242 = pneg %p169
        $region26: #{tpu_custom_call.1} parent=11 // pred_check_branch
          %244 = sbr.rel (%p242) target = $region28
        $region27: #{tpu_custom_call.1} parent=11 // pred_region
          _
        $region28: #{tpu_custom_call.1} parent=11 // pred_fallthru
          _
        // Predicated region
        $region29: #{tpu_custom_call.1} parent=11 // pred_check
          %p245 = pneg %p190
        $region30: #{tpu_custom_call.1} parent=11 // pred_check_branch
          %247 = sbr.rel (%p245) target = $region32
        $region31: #{tpu_custom_call.1} parent=11 // pred_region
          _
        $region32: #{tpu_custom_call.1} parent=11 // pred_fallthru
          _
      $region12: #{tpu_custom_call.1} parent=5 // pred_fallthru
        _
      %p248 = scmp.lt.s32.totalorder %s17, 2
      // Predicated region
      $region33: #{tpu_custom_call.1} parent=5 // pred_check
        %p249 = pneg %p248
      $region34: #{tpu_custom_call.1} parent=5 // pred_check_branch
        %251 = sbr.rel (%p249) target = $region36
      $region35: #{tpu_custom_call.1} parent=5 // pred_region
        // Predicated region
        $region37: #{tpu_custom_call.1} parent=35 // pred_check
          %p252 = pneg %p51
        $region38: #{tpu_custom_call.1} parent=35 // pred_check_branch
          %254 = sbr.rel (%p252) target = $region40
        $region39: #{tpu_custom_call.1} parent=35 // pred_region
          %p255 = scmp.lt.s32.totalorder %s24, 1
          %s256 = scalar_select %p255, %s24, 1
          %p257 = scmp.lt.s32.totalorder %s25, 0
          %s258 = scalar_select %p257, %s25, 0
          %s259 = smul.addr %s256, 2
          %s260 = sadd.s32 %s258, %s259
          %s261 = smul.addr %s260, 4
          %s262 = scalar_lea.vmem %s0, %s261
        $region40: #{tpu_custom_call.1} parent=35 // pred_fallthru
          _
        // Predicated region
        $region41: #{tpu_custom_call.1} parent=35 // pred_check
          %p263 = pneg %p79
        $region42: #{tpu_custom_call.1} parent=35 // pred_check_branch
          %265 = sbr.rel (%p263) target = $region44
        $region43: #{tpu_custom_call.1} parent=35 // pred_region
          %p266 = scmp.lt.s32.totalorder %s24, 1
          %s267 = scalar_select %p266, %s24, 1
          %p268 = scmp.lt.s32.totalorder %s25, 0
          %s269 = scalar_select %p268, %s25, 0
          %s270 = sadd.s32 %s269, %s267
          %s271 = smul.addr %s270, 4
          %s272 = scalar_lea.vmem %s1, %s271
        $region44: #{tpu_custom_call.1} parent=35 // pred_fallthru
          _
      $region36: #{tpu_custom_call.1} parent=5 // pred_fallthru
        _
      %p273 = scmp.le.s32.totalorder 1, %s17
      %p274 = scmp.lt.s32.totalorder %s17, 3
      %p275 = pnand %p273, %p274
      %p276 = pneg %p275
      // Predicated region
      $region45: #{tpu_custom_call.1} parent=5 // pred_check
        _
      $region46: #{tpu_custom_call.1} parent=5 // pred_check_branch
        %278 = sbr.rel (%p275) target = $region48
      $region47: #{tpu_custom_call.1} parent=5 // pred_region
        %s279 = ssub.s32 %s17, 1
        %p280 = scmp.lt.s32.totalorder %s26, 1
        %s281 = scalar_select %p280, %s26, 1
        %p282 = scmp.lt.s32.totalorder %s27, 0
        %s283 = scalar_select %p282, %s27, 0
        %s284 = smul.addr %s281, 2
        %s285 = sadd.s32 %s283, %s284
        %s286 = smul.addr %s285, 4
        %s287 = scalar_lea.vmem %s0, %s286
        %p288 = pneg %p57
        %p289 = pneg %p54
        %p290 = scmp.lt.s32.totalorder %s26, 1
        %s291 = scalar_select %p290, %s26, 1
        %p292 = scmp.lt.s32.totalorder %s27, 0
        %s293 = scalar_select %p292, %s27, 0
        %s294 = sadd.s32 %s293, %s291
        %s295 = smul.addr %s294, 4
        %s296 = scalar_lea.vmem %s1, %s295
        %p297 = pneg %p85
        %p298 = pneg %p82
        %p299 = pneg %p106
        %p300 = pneg %p103
        %p301 = pneg %p127
        %p302 = pneg %p124
        %p303 = pneg %p148
        %p304 = pneg %p145
        %p305 = pneg %p169
        %p306 = pneg %p166
        %p307 = pneg %p190
        %p308 = pneg %p187
        %p309 = pneg %p218
        %p310 = pneg %p215
        %s311 = sand.u32 %s205, 1
        %s312 = scalar_lea.sflag [#allocation4], %s311
        %s313 = sand.u32 %s205, 1
        %s314 = scalar_lea.vmem [#allocation3], %s313
        %p315 = scmp.lt.s32.totalorder %s26, 1
        %s316 = scalar_select %p315, %s26, 1
        %p317 = scmp.lt.s32.totalorder %s27, 0
        %s318 = scalar_select %p317, %s27, 0
        %s319 = smul.addr %s316, 2
        %s320 = sadd.s32 %s318, %s319
        %s321 = smul.addr %s320, 4
        %s322 = scalar_lea.vmem %s0, %s321
        %p323 = scmp.lt.s32.totalorder %s26, 1
        %s324 = scalar_select %p323, %s26, 1
        %p325 = scmp.lt.s32.totalorder %s27, 0
        %s326 = scalar_select %p325, %s27, 0
        %s327 = sadd.s32 %s326, %s324
        %s328 = smul.addr %s327, 4
        %s329 = scalar_lea.vmem %s1, %s328
        %v331 = vld [vmem:[%s2] sm:$0xf]
        %v332 = vld [vmem:[%s322] sm:$0xf]
        %v333 = vld [vmem:[%s322 + $0x4] sm:$0xf]
        %v334 = vld [vmem:[%s3] sm:$0xf]
        %v335 = vld [vmem:[%s329] sm:$0xf]
        %vm336 = vcmask 64512
        %v338 = vsel %vm336, %v334, 0
        %vm340 = vcmask 1043456
        %v342 = vsel %vm340, %v335, 0
        %344 = vmatprep.subr.bf16.mxu0 0
        %345 = vmatpush1.bf16.msra.mxu0 %v342
        %346 = vmatprep.subr.bf16.mxu0 0
        %347 = vmatpush1.bf16.msra.mxu0 0
        %348 = vmatprep.subr.bf16.mxu0 0
        %349 = vmatpush1.bf16.msra.mxu0 0
        %350 = vmatprep.subr.bf16.mxu0 0
        %351 = vmatpush1.bf16.msra.mxu0 0
        %352 = vmatprep.subr.bf16.mxu0 0
        %353 = vmatpush1.bf16.msra.mxu0 0
        %354 = vmatprep.subr.bf16.mxu0 0
        %355 = vmatpush1.bf16.msra.mxu0 0
        %356 = vmatprep.subr.bf16.mxu0 0
        %357 = vmatpush1.bf16.msra.mxu0 0
        %358 = vmatprep.subr.bf16.mxu0 0
        %359 = vmatpush1.bf16.msra.mxu0 0
        %360 = vmatprep.subr.bf16.mxu0 0
        %361 = vmatpush1.bf16.msra.mxu0 0
        %362 = vmatprep.subr.bf16.mxu0 0
        %363 = vmatpush1.bf16.msra.mxu0 0
        %364 = vmatprep.subr.bf16.mxu0 0
        %365 = vmatpush1.bf16.msra.mxu0 0
        %366 = vmatprep.subr.bf16.mxu0 0
        %367 = vmatpush1.bf16.msra.mxu0 0
        %368 = vmatprep.subr.bf16.mxu0 0
        %369 = vmatpush1.bf16.msra.mxu0 0
        %370 = vmatprep.subr.bf16.mxu0 0
        %371 = vmatpush1.bf16.msra.mxu0 0
        %372 = vmatprep.subr.bf16.mxu0 0
        %373 = vmatpush1.bf16.msra.mxu0 0
        %374 = vmatprep.subr.bf16.mxu0 0
        %375 = vmatpush1.bf16.msra.mxu0 0
        %376 = vmatprep.mubr.bf16.mxu0 0
        %377 = vmatmul.mubr.bf16.gmra.mrb[0].mxu0 %v338
        %v378 = vpop.f32.mrb[0].mxu0
        %v379 = vadd.f32 0.0, %v378
        %v380 = vpop.f32.mrb[0].mxu0
        %v381 = vpop.f32.mrb[0].mxu0
        %v382 = vpop.f32.mrb[0].mxu0
        %383 = vdwg.mxu0
        %v386 = vunpack.c.l.b16 %v332
        %v387 = vunpack.c.l.b16 %v333
        %v388 = vpack.c.b16 %v387, %v386
        %vm390 = vcmask 130048
        %v392 = vsel %vm390, %v331, 0
        %394 = vmatprep.subr.bf16.mxu0 0
        %395 = vmatpush1.bf16.msra.mxu0 %v388
        %396 = vmatprep.subr.bf16.mxu0 0
        %397 = vmatpush1.bf16.msra.mxu0 0
        %398 = vmatprep.subr.bf16.mxu0 0
        %399 = vmatpush1.bf16.msra.mxu0 0
        %400 = vmatprep.subr.bf16.mxu0 0
        %401 = vmatpush1.bf16.msra.mxu0 0
        %402 = vmatprep.subr.bf16.mxu0 0
        %403 = vmatpush1.bf16.msra.mxu0 0
        %404 = vmatprep.subr.bf16.mxu0 0
        %405 = vmatpush1.bf16.msra.mxu0 0
        %406 = vmatprep.subr.bf16.mxu0 0
        %407 = vmatpush1.bf16.msra.mxu0 0
        %408 = vmatprep.subr.bf16.mxu0 0
        %409 = vmatpush1.bf16.msra.mxu0 0
        %410 = vmatprep.subr.bf16.mxu0 0
        %411 = vmatpush1.bf16.msra.mxu0 0
        %412 = vmatprep.subr.bf16.mxu0 0
        %413 = vmatpush1.bf16.msra.mxu0 0
        %414 = vmatprep.subr.bf16.mxu0 0
        %415 = vmatpush1.bf16.msra.mxu0 0
        %416 = vmatprep.subr.bf16.mxu0 0
        %417 = vmatpush1.bf16.msra.mxu0 0
        %418 = vmatprep.subr.bf16.mxu0 0
        %419 = vmatpush1.bf16.msra.mxu0 0
        %420 = vmatprep.subr.bf16.mxu0 0
        %421 = vmatpush1.bf16.msra.mxu0 0
        %422 = vmatprep.subr.bf16.mxu0 0
        %423 = vmatpush1.bf16.msra.mxu0 0
        %424 = vmatprep.subr.bf16.mxu0 0
        %425 = vmatpush1.bf16.msra.mxu0 0
        %426 = vmatprep.mubr.bf16.mxu0 0
        %427 = vmatmul.mubr.bf16.gmra.mrb[0].mxu0 %v392
        %v428 = vpop.f32.mrb[0].mxu0
        %v429 = vadd.f32 %v379, %v428
        %v430 = vpop.f32.mrb[0].mxu0
        %v431 = vpop.f32.mrb[0].mxu0
        %v432 = vpop.f32.mrb[0].mxu0
        %433 = vdwg.mxu0
        %v434 = vld [vmem:[%s4] sm:$0xff]
        %436 = vset.pattern.permute.xlu0 0
        %437 = vperm.xlu0 %436, %v434
        %v438 = vpop.permute.xlu0 %437
        %v440 = vadd.f32 %v429, %v438
        %v441 = vmax.f32 %v440, 0.0
        %v442 = vld [vmem:[%s5] sm:$0xff]
        %444 = vset.pattern.permute.xlu0 0
        %445 = vperm.xlu0 %444, %v442
        %v446 = vpop.permute.xlu0 %445
        %v448 = vmul.f32 %v441, %v446
        %vm449 = vcmask 523264
        %v450 = vsel %vm449, %v448, 0.0
        %v451 = vrot.slane %v450, 4
        %v452 = vadd.f32 %v450, %v451
        %v453 = vrot.slane %v452, 2
        %v454 = vadd.f32 %v452, %v453
        %v455 = vrot.slane %v454, 1
        %v456 = vadd.f32 %v454, %v455
        %s457 = sld [smem:[#allocation2]]
        %v458 = vstv %s457
        %v459 = vadd.f32 %v456, %v458
        %v460 = vmul.f32 %v459, 0.5
        %v461 = vtanh.pop %v460
        %v462 = vadd.f32 %v461, 1.0
        %v463 = vmul.f32 %v462, 0.5
        %vm464 = vcmask 516096
        %465 = vst.msk [vmem:[%s314] sm:$0x1] %vm464, %v463
        %s466 = sand.u32 %s205, 1
        %s467 = scalar_lea.sflag [#allocation4], %s466
        %s468 = sand.u32 %s205, 1
        %s469 = scalar_lea.vmem [#allocation3], %s468
        // Predicated region
        $region49: #{tpu_custom_call.1} parent=47 // pred_check
          %p470 = pneg %p215
        $region50: #{tpu_custom_call.1} parent=47 // pred_check_branch
          %472 = sbr.rel (%p470) target = $region52
        $region51: #{tpu_custom_call.1} parent=47 // pred_region
          %s474 = ssub.s32 16, 16
          %475 = vsyncadd %s467, %s474
          %s476 = sadd.s32 %s27, %s26
          %s477 = smul.addr %s476, 16
          %s478 = scalar_lea.hbm %s7, %s477
          %s480 = sshll.u32 %s469, 4
          %s481 = int_to_ptr.vmem [resolvable:$true] %s480
          %483 = dma.vmem_to_hbm [thread:$0]  %s481, 16, %s478, %s467
        $region52: #{tpu_custom_call.1} parent=47 // pred_fallthru
          _
      $region48: #{tpu_custom_call.1} parent=5 // pred_fallthru
        _
      %p484 = scmp.le.s32.totalorder 2, %s17
      // Predicated region
      $region53: #{tpu_custom_call.1} parent=5 // pred_check
        %p485 = pneg %p484
      $region54: #{tpu_custom_call.1} parent=5 // pred_check_branch
        %487 = sbr.rel (%p485) target = $region56
      $region55: #{tpu_custom_call.1} parent=5 // pred_region
        %s488 = ssub.s32 %s17, 2
        // Predicated region
        $region57: #{tpu_custom_call.1} parent=55 // pred_check
          %p489 = pneg %p221
        $region58: #{tpu_custom_call.1} parent=55 // pred_check_branch
          %491 = sbr.rel (%p489) target = $region60
        $region59: #{tpu_custom_call.1} parent=55 // pred_region
          %s492 = sand.u32 %s206, 1
          %s493 = scalar_lea.sflag [#allocation4], %s492
          %s494 = sand.u32 %s206, 1
          %s495 = scalar_lea.vmem [#allocation3], %s494
          %496 = dma.done %s493, 16
        $region60: #{tpu_custom_call.1} parent=55 // pred_fallthru
          _
      $region56: #{tpu_custom_call.1} parent=5 // pred_fallthru
        _
    $region6: #{tpu_custom_call.1} parent=1 // loop_footer
      %s21 = sadd.s32 1, %s17
    $region7: #{tpu_custom_call.1} parent=1 // loop_footer_branch
      %16 = sbr.rel target = $region3
    $region8: #{tpu_custom_call.1} parent=1 // loop_exit
      _
    %497 = vsyncpa [#allocation4], 1
    %s498 = scalar_lea.sflag [#allocation4], 1
    %499 = vsyncpa %s498, 1

</llo_original>
